<compile_context>
chip_gen: v7x
topology: tpu7x:2x2x1
jax: 0.10.0
libtpu: 0.0.40
codegen_flags: <defaults>
</compile_context>

<pallas_src>
import jax
import jax.numpy as jnp
from jax.experimental import pallas as pl
from jax.experimental.pallas import tpu as pltpu

OUT_DIM = 2
OUT_PAD = 128  # lane-dense output width


def _round_up(x, m):
    return ((x + m - 1) // m) * m


def mlp_kernel(alphas_ref,                       # SMEM: (3,) PReLU slopes
               x_ref,                            # (TB, 6)      f32
               w1_ref, b1_ref,                   # (6, 256) bf16, (1, 256) f32
               w2_ref, b2_ref,                   # (256, 128) bf16, (1, 128) f32
               w3_ref, b3_ref,                   # (128, 64) bf16, (1, 64) f32
               w4_ref, b4_ref,                   # (64, 128) bf16, (1, 128) f32
               o_ref):                           # (TB, 128)    f32
    # Read the PReLU slopes once; reuse the scalars per layer.
    a0 = alphas_ref[0]
    a1 = alphas_ref[1]
    a2 = alphas_ref[2]

    # bf16 operands into the MXU, f32 accumulation, bias/PReLU in f32.
    x = x_ref[...].astype(jnp.bfloat16)

    h1 = jnp.dot(x, w1_ref[...], preferred_element_type=jnp.float32) + b1_ref[...]
    h1 = jnp.where(h1 >= 0, h1, a0 * h1)

    h2 = jnp.dot(h1.astype(jnp.bfloat16), w2_ref[...],
                 preferred_element_type=jnp.float32) + b2_ref[...]
    h2 = jnp.where(h2 >= 0, h2, a1 * h2)

    h3 = jnp.dot(h2.astype(jnp.bfloat16), w3_ref[...],
                 preferred_element_type=jnp.float32) + b3_ref[...]
    h3 = jnp.where(h3 >= 0, h3, a2 * h3)

    h4 = jnp.dot(h3.astype(jnp.bfloat16), w4_ref[...],
                 preferred_element_type=jnp.float32) + b4_ref[...]
    o_ref[...] = h4.astype(o_ref.dtype)


def net_forward(x, params, *, tile_b=512):
    """Run the Net forward pass. x: [B, 6] float32, any B >= 1."""
    (w1, b1, w2, b2, w3, b3, w4, b4, alphas) = params
    B = x.shape[0]

    # Pad the last layer to a lane-dense 128 output columns (zeros elsewhere).
    w4p = jnp.zeros((w4.shape[0], OUT_PAD), jnp.float32).at[:, :OUT_DIM].set(w4)
    b4p = jnp.zeros((1, OUT_PAD), jnp.float32).at[:, :OUT_DIM].set(b4)

    # MXU-native bf16 weights (halves weight DMA / VMEM); biases stay f32.
    w1b = w1.astype(jnp.bfloat16)
    w2b = w2.astype(jnp.bfloat16)
    w3b = w3.astype(jnp.bfloat16)
    w4b = w4p.astype(jnp.bfloat16)

    # Batch tiling: big tiles feed the MXU; keep >=2 grid steps when the batch
    # is large enough so both v7x TensorCores get work.
    b8 = _round_up(B, 8)
    tb = min(tile_b, b8)
    if b8 == tb and b8 >= 16:
        tb = _round_up(b8 // 2, 8)
    bp = _round_up(b8, tb)
    grid = (bp // tb,)

    x_pad = x if bp == B else jnp.pad(x, ((0, bp - B), (0, 0)))

    full = lambda shape: pl.BlockSpec(shape, lambda i: (0, 0))

    flops = 2 * bp * (6 * 256 + 256 * 128 + 128 * 64 + 64 * OUT_PAD)
    bytes_accessed = (
        2 * (6 * 256 + 256 * 128 + 128 * 64 + 64 * OUT_PAD)      # bf16 weights
        + 4 * (256 + 128 + 64 + OUT_PAD)                         # f32 biases
        + 4 * bp * 6 + 4 * bp * OUT_PAD                          # x in, out
    )
    cost = pl.CostEstimate(flops=flops, transcendentals=0,
                           bytes_accessed=bytes_accessed)

    out = pl.pallas_call(
        mlp_kernel,
        out_shape=jax.ShapeDtypeStruct((bp, OUT_PAD), jnp.float32),
        grid_spec=pltpu.PrefetchScalarGridSpec(
            num_scalar_prefetch=0,
            grid=grid,
            in_specs=[
                pl.BlockSpec(memory_space=pltpu.SMEM),              # alphas
                pl.BlockSpec((tb, 6), lambda i: (i, 0)),            # x tile
                full(w1b.shape), full(b1.shape),
                full(w2b.shape), full(b2.shape),
                full(w3b.shape), full(b3.shape),
                full(w4b.shape), full(b4p.shape),
            ],
            out_specs=pl.BlockSpec((tb, OUT_PAD), lambda i: (i, 0)),
        ),
        compiler_params=pltpu.CompilerParams(
            dimension_semantics=("parallel",)),
        cost_estimate=cost,
    )(alphas, x_pad, w1b, b1, w2b, b2, w3b, b3, w4b, b4p)

    return out[:B, :OUT_DIM]


def init_params(key):
    """Deterministic init mimicking Net.reset_weights():
    kaiming_normal_(nonlinearity='relu') on weights, bias filled with 0.01,
    PReLU slopes at the PyTorch default 0.25."""
    dims = [(6, 256), (256, 128), (128, 64), (64, 2)]
    keys = jax.random.split(key, len(dims))
    params = []
    for (fan_in, fan_out), k in zip(dims, keys):
        std = jnp.sqrt(2.0 / fan_in)                      # kaiming normal, relu gain
        w = std * jax.random.normal(k, (fan_in, fan_out), dtype=jnp.float32)
        b = jnp.full((1, fan_out), 0.01, dtype=jnp.float32)
        params.extend([w, b])
    alphas = jnp.full((3,), 0.25, dtype=jnp.float32)      # PReLU default
    params.append(alphas)
    return tuple(params)


def reference_forward(x, params):
    (w1, b1, w2, b2, w3, b3, w4, b4, alphas) = params
    h = x @ w1 + b1
    h = jnp.where(h >= 0, h, alphas[0] * h)
    h = h @ w2 + b2
    h = jnp.where(h >= 0, h, alphas[1] * h)
    h = h @ w3 + b3
    h = jnp.where(h >= 0, h, alphas[2] * h)
    return h @ w4 + b4


if __name__ == "__main__":
    key = jax.random.PRNGKey(0)
    k_param, k_x = jax.random.split(key)

    params = init_params(k_param)
    x = jax.random.normal(k_x, (8, 6), dtype=jnp.float32)   # batch=8, 6 input dims

    out = net_forward(x, params)
    out = jax.block_until_ready(out)

    ref = reference_forward(x, params)
    assert out.shape == (8, 2)
    # bf16 MXU operands with f32 accumulation -> looser tolerance than pure f32.
    assert jnp.allclose(out, ref, atol=5e-2, rtol=5e-2)

    print("KERNEL_OK")
</pallas_src>

<mosaic_0001>
module attributes {stable_mosaic.version = 11 : i64} {
  func.func @mlp_kernel(%arg0: i32, %arg1: memref<3xf32, #tpu.memory_space<smem>>, %arg2: memref<8x6xf32, #tpu.memory_space<vmem>>, %arg3: memref<6x256xbf16, #tpu.memory_space<vmem>>, %arg4: memref<1x256xf32, #tpu.memory_space<vmem>>, %arg5: memref<256x128xbf16, #tpu.memory_space<vmem>>, %arg6: memref<1x128xf32, #tpu.memory_space<vmem>>, %arg7: memref<128x64xbf16, #tpu.memory_space<vmem>>, %arg8: memref<1x64xf32, #tpu.memory_space<vmem>>, %arg9: memref<64x128xbf16, #tpu.memory_space<vmem>>, %arg10: memref<1x128xf32, #tpu.memory_space<vmem>>, %arg11: memref<8x128xf32, #tpu.memory_space<vmem>>) attributes {dimension_semantics = [#tpu.dimension_semantics<parallel>], iteration_bounds = array<i64: 1>, scalar_prefetch = 0 : i64, scratch_operands = 0 : i64, tpu.core_type = #tpu.core_type<tc>, window_params = [{transform_indices = @transform_0, window_bounds = array<i64: 3>}, {transform_indices = @transform_1, window_bounds = array<i64: 8, 6>}, {pipeline_mode = #tpu.pipeline_mode<synchronous>, transform_indices = @transform_2, window_bounds = array<i64: 6, 256>}, {pipeline_mode = #tpu.pipeline_mode<synchronous>, transform_indices = @transform_3, window_bounds = array<i64: 1, 256>}, {pipeline_mode = #tpu.pipeline_mode<synchronous>, transform_indices = @transform_4, window_bounds = array<i64: 256, 128>}, {pipeline_mode = #tpu.pipeline_mode<synchronous>, transform_indices = @transform_5, window_bounds = array<i64: 1, 128>}, {pipeline_mode = #tpu.pipeline_mode<synchronous>, transform_indices = @transform_6, window_bounds = array<i64: 128, 64>}, {pipeline_mode = #tpu.pipeline_mode<synchronous>, transform_indices = @transform_7, window_bounds = array<i64: 1, 64>}, {pipeline_mode = #tpu.pipeline_mode<synchronous>, transform_indices = @transform_8, window_bounds = array<i64: 64, 128>}, {pipeline_mode = #tpu.pipeline_mode<synchronous>, transform_indices = @transform_9, window_bounds = array<i64: 1, 128>}, {transform_indices = @transform_10, window_bounds = array<i64: 8, 128>}]} {
    %c0 = arith.constant 0 : index
    %0 = memref.load %arg1[%c0] : memref<3xf32, #tpu.memory_space<smem>>
    %c1 = arith.constant 1 : index
    %1 = memref.load %arg1[%c1] : memref<3xf32, #tpu.memory_space<smem>>
    %c2 = arith.constant 2 : index
    %2 = memref.load %arg1[%c2] : memref<3xf32, #tpu.memory_space<smem>>
    %c0_0 = arith.constant 0 : index
    %c0_1 = arith.constant 0 : index
    %3 = vector.load %arg2[%c0_0, %c0_1] : memref<8x6xf32, #tpu.memory_space<vmem>>, vector<8x6xf32>
    %4 = arith.truncf %3 : vector<8x6xf32> to vector<8x6xbf16>
    %c0_2 = arith.constant 0 : index
    %c0_3 = arith.constant 0 : index
    %5 = vector.load %arg3[%c0_2, %c0_3] : memref<6x256xbf16, #tpu.memory_space<vmem>>, vector<6x256xbf16>
    %cst = arith.constant dense<0.000000e+00> : vector<8x256xf32>
    %6 = tpu.matmul %4, %5, %cst {dimension_numbers = #tpu.dot_dimension_numbers<[1], [0], [0], [1], [0, 0, 1, 1], [], []>} : vector<8x6xbf16>, vector<6x256xbf16>, vector<8x256xf32> -> vector<8x256xf32>
    %c0_4 = arith.constant 0 : index
    %c0_5 = arith.constant 0 : index
    %7 = vector.load %arg4[%c0_4, %c0_5] : memref<1x256xf32, #tpu.memory_space<vmem>>, vector<1x256xf32>
    %8 = vector.broadcast %7 : vector<1x256xf32> to vector<8x256xf32>
    %9 = arith.addf %6, %8 : vector<8x256xf32>
    %cst_6 = arith.constant 0.000000e+00 : f32
    %10 = vector.broadcast %cst_6 : f32 to vector<8x256xf32>
    %11 = arith.cmpf oge, %9, %10 : vector<8x256xf32>
    %12 = vector.broadcast %0 : f32 to vector<8x256xf32>
    %13 = arith.mulf %12, %9 : vector<8x256xf32>
    %14 = arith.select %11, %9, %13 : vector<8x256xi1>, vector<8x256xf32>
    %15 = arith.truncf %14 : vector<8x256xf32> to vector<8x256xbf16>
    %c0_7 = arith.constant 0 : index
    %c0_8 = arith.constant 0 : index
    %16 = vector.load %arg5[%c0_7, %c0_8] : memref<256x128xbf16, #tpu.memory_space<vmem>>, vector<256x128xbf16>
    %cst_9 = arith.constant dense<0.000000e+00> : vector<8x128xf32>
    %17 = tpu.matmul %15, %16, %cst_9 {dimension_numbers = #tpu.dot_dimension_numbers<[1], [0], [0], [1], [0, 0, 1, 1], [], []>} : vector<8x256xbf16>, vector<256x128xbf16>, vector<8x128xf32> -> vector<8x128xf32>
    %c0_10 = arith.constant 0 : index
    %c0_11 = arith.constant 0 : index
    %18 = vector.load %arg6[%c0_10, %c0_11] : memref<1x128xf32, #tpu.memory_space<vmem>>, vector<1x128xf32>
    %19 = vector.broadcast %18 : vector<1x128xf32> to vector<8x128xf32>
    %20 = arith.addf %17, %19 : vector<8x128xf32>
    %cst_12 = arith.constant 0.000000e+00 : f32
    %21 = vector.broadcast %cst_12 : f32 to vector<8x128xf32>
    %22 = arith.cmpf oge, %20, %21 : vector<8x128xf32>
    %23 = vector.broadcast %1 : f32 to vector<8x128xf32>
    %24 = arith.mulf %23, %20 : vector<8x128xf32>
    %25 = arith.select %22, %20, %24 : vector<8x128xi1>, vector<8x128xf32>
    %26 = arith.truncf %25 : vector<8x128xf32> to vector<8x128xbf16>
    %c0_13 = arith.constant 0 : index
    %c0_14 = arith.constant 0 : index
    %27 = vector.load %arg7[%c0_13, %c0_14] : memref<128x64xbf16, #tpu.memory_space<vmem>>, vector<128x64xbf16>
    %cst_15 = arith.constant dense<0.000000e+00> : vector<8x64xf32>
    %28 = tpu.matmul %26, %27, %cst_15 {dimension_numbers = #tpu.dot_dimension_numbers<[1], [0], [0], [1], [0, 0, 1, 1], [], []>} : vector<8x128xbf16>, vector<128x64xbf16>, vector<8x64xf32> -> vector<8x64xf32>
    %c0_16 = arith.constant 0 : index
    %c0_17 = arith.constant 0 : index
    %29 = vector.load %arg8[%c0_16, %c0_17] : memref<1x64xf32, #tpu.memory_space<vmem>>, vector<1x64xf32>
    %30 = vector.broadcast %29 : vector<1x64xf32> to vector<8x64xf32>
    %31 = arith.addf %28, %30 : vector<8x64xf32>
    %cst_18 = arith.constant 0.000000e+00 : f32
    %32 = vector.broadcast %cst_18 : f32 to vector<8x64xf32>
    %33 = arith.cmpf oge, %31, %32 : vector<8x64xf32>
    %34 = vector.broadcast %2 : f32 to vector<8x64xf32>
    %35 = arith.mulf %34, %31 : vector<8x64xf32>
    %36 = arith.select %33, %31, %35 : vector<8x64xi1>, vector<8x64xf32>
    %37 = arith.truncf %36 : vector<8x64xf32> to vector<8x64xbf16>
    %c0_19 = arith.constant 0 : index
    %c0_20 = arith.constant 0 : index
    %38 = vector.load %arg9[%c0_19, %c0_20] : memref<64x128xbf16, #tpu.memory_space<vmem>>, vector<64x128xbf16>
    %cst_21 = arith.constant dense<0.000000e+00> : vector<8x128xf32>
    %39 = tpu.matmul %37, %38, %cst_21 {dimension_numbers = #tpu.dot_dimension_numbers<[1], [0], [0], [1], [0, 0, 1, 1], [], []>} : vector<8x64xbf16>, vector<64x128xbf16>, vector<8x128xf32> -> vector<8x128xf32>
    %c0_22 = arith.constant 0 : index
    %c0_23 = arith.constant 0 : index
    %40 = vector.load %arg10[%c0_22, %c0_23] : memref<1x128xf32, #tpu.memory_space<vmem>>, vector<1x128xf32>
    %41 = vector.broadcast %40 : vector<1x128xf32> to vector<8x128xf32>
    %42 = arith.addf %39, %41 : vector<8x128xf32>
    %c0_24 = arith.constant 0 : index
    %c0_25 = arith.constant 0 : index
    %43 = vector.load %arg11[%c0_24, %c0_25] : memref<8x128xf32, #tpu.memory_space<vmem>>, vector<8x128xf32>
    tpu.vector_store %arg11[%c0_24, %c0_25], %42 {strides = array<i32>} : memref<8x128xf32, #tpu.memory_space<vmem>>, vector<8x128xf32>,
    return
  }
  func.func @transform_0(%arg0: i32) -> i32 {
    %c0_i32 = arith.constant 0 : i32
    %c0_i32_0 = arith.constant 0 : i32
    return %c0_i32 : i32
  }
  func.func @transform_1(%arg0: i32) -> (i32, i32) {
    %c0_i32 = arith.constant 0 : i32
    %c0_i32_0 = arith.constant 0 : i32
    return %arg0, %c0_i32 : i32, i32
  }
  func.func @transform_2(%arg0: i32) -> (i32, i32) {
    %c0_i32 = arith.constant 0 : i32
    %c0_i32_0 = arith.constant 0 : i32
    %c0_i32_1 = arith.constant 0 : i32
    return %c0_i32, %c0_i32_0 : i32, i32
  }
  func.func @transform_3(%arg0: i32) -> (i32, i32) {
    %c0_i32 = arith.constant 0 : i32
    %c0_i32_0 = arith.constant 0 : i32
    %c0_i32_1 = arith.constant 0 : i32
    return %c0_i32, %c0_i32_0 : i32, i32
  }
  func.func @transform_4(%arg0: i32) -> (i32, i32) {
    %c0_i32 = arith.constant 0 : i32
    %c0_i32_0 = arith.constant 0 : i32
    %c0_i32_1 = arith.constant 0 : i32
    return %c0_i32, %c0_i32_0 : i32, i32
  }
  func.func @transform_5(%arg0: i32) -> (i32, i32) {
    %c0_i32 = arith.constant 0 : i32
    %c0_i32_0 = arith.constant 0 : i32
    %c0_i32_1 = arith.constant 0 : i32
    return %c0_i32, %c0_i32_0 : i32, i32
  }
  func.func @transform_6(%arg0: i32) -> (i32, i32) {
    %c0_i32 = arith.constant 0 : i32
    %c0_i32_0 = arith.constant 0 : i32
    %c0_i32_1 = arith.constant 0 : i32
    return %c0_i32, %c0_i32_0 : i32, i32
  }
  func.func @transform_7(%arg0: i32) -> (i32, i32) {
    %c0_i32 = arith.constant 0 : i32
    %c0_i32_0 = arith.constant 0 : i32
    %c0_i32_1 = arith.constant 0 : i32
    return %c0_i32, %c0_i32_0 : i32, i32
  }
  func.func @transform_8(%arg0: i32) -> (i32, i32) {
    %c0_i32 = arith.constant 0 : i32
    %c0_i32_0 = arith.constant 0 : i32
    %c0_i32_1 = arith.constant 0 : i32
    return %c0_i32, %c0_i32_0 : i32, i32
  }
  func.func @transform_9(%arg0: i32) -> (i32, i32) {
    %c0_i32 = arith.constant 0 : i32
    %c0_i32_0 = arith.constant 0 : i32
    %c0_i32_1 = arith.constant 0 : i32
    return %c0_i32, %c0_i32_0 : i32, i32
  }
  func.func @transform_10(%arg0: i32) -> (i32, i32) {
    %c0_i32 = arith.constant 0 : i32
    %c0_i32_0 = arith.constant 0 : i32
    return %arg0, %c0_i32 : i32, i32
  }
}

</mosaic_0001>

<llo_original>
// kernel: tpu_custom_call.1
$region0: #{tpu_custom_call.1}
  #allocation0 [shape = 'u32[]', space=smem, size = 0x4, offset = 0x4, fixed_abs, tag = 'smem constant byte address 0x4 - core index']
  #allocation1 [shape = 'u32[144,128]{1,0:T(1,128)}', space=vmem, size = 0x12000, scoped, tag = 'internal scratch']
  %s0 = inlined_call_operand.vmem [shape: f32[3], index: 0, kind: input, shape index: {}]
  %s1 = inlined_call_operand.vmem [shape: f32[8,6], index: 1, kind: input, shape index: {}]
  %s2 = inlined_call_operand.vmem [shape: bf16[6,256], index: 2, kind: input, shape index: {}]
  %s3 = inlined_call_operand.vmem [shape: f32[1,256], index: 3, kind: input, shape index: {}]
  %s4 = inlined_call_operand.hbm [shape: bf16[256,128], index: 4, kind: input, shape index: {}]
  %s5 = inlined_call_operand.vmem [shape: f32[1,128], index: 5, kind: input, shape index: {}]
  %s6 = inlined_call_operand.vmem [shape: bf16[128,64], index: 6, kind: input, shape index: {}]
  %s7 = inlined_call_operand.vmem [shape: f32[1,64], index: 7, kind: input, shape index: {}]
  %s8 = inlined_call_operand.vmem [shape: bf16[64,128], index: 8, kind: input, shape index: {}]
  %s9 = inlined_call_operand.vmem [shape: f32[1,128], index: 9, kind: input, shape index: {}]
  %s10 = inlined_call_operand.hbm [shape: f32[8,128], index: 10, kind: output, shape index: {}]
  %s11 = sld [smem:[#allocation0]]
  $region58: #{tpu_custom_call.1} parent=0
    _
  %s13 = ssub.s32 1, %s11
  %s14 = scalar_select 0, %s13, %s11
  $region1: #{tpu_custom_call.1} parent=0
    #allocation2 [shape = 'u8[512]{0}', space=smem, size = 0x200, scoped, tag = 'input window, operand 0, single buffered']
    #allocation3 [shape = 's32[1]{0}', space=sflag, size = 0x4, scoped, tag = 'scoped memory for tpu_custom_call.1']
    #allocation4 [shape = 's32[1]{0}', space=sflag, size = 0x4, scoped, tag = 'scoped memory for tpu_custom_call.1']
    #allocation5 [shape = 's32[1]{0}', space=sflag, size = 0x4, scoped, tag = 'scoped memory for tpu_custom_call.1']
    #allocation6 [shape = 'u8[65536]{0}', space=vmem, size = 0x10000, scoped, tag = 'input window, operand 4, single buffered']
    #allocation7 [shape = 'u8[4096]{0}', space=vmem, size = 0x1000, scoped, tag = 'output window, operand 0, single buffered']
    %15 = vsyncpa [#allocation5], 0
    %16 = vsyncpa [#allocation3], 0
    %17 = vsyncpa [#allocation4], 0
    // Predicated region
    $region2: #{tpu_custom_call.1} parent=1 // pred_check
      _
    $region3: #{tpu_custom_call.1} parent=1 // pred_check_branch
      %19 = sbr.rel (0) target = $region5
    $region4: #{tpu_custom_call.1} parent=1 // pred_region
      %s21 = ssub.s32 16, 16
      %22 = vsyncadd [#allocation5], %s21
      %s24 = sshll.u32 %s0, 4
      %s25 = int_to_ptr.vmem [resolvable:$true] %s24
      %27 = dma.vmem_to_smem %s25, 16, [#allocation2], [#allocation5]
    $region5: #{tpu_custom_call.1} parent=1 // pred_fallthru
      _
    // Predicated region
    $region6: #{tpu_custom_call.1} parent=1 // pred_check
      _
    $region7: #{tpu_custom_call.1} parent=1 // pred_check_branch
      %29 = sbr.rel (0) target = $region9
    $region8: #{tpu_custom_call.1} parent=1 // pred_region
      _
    $region9: #{tpu_custom_call.1} parent=1 // pred_fallthru
      _
    // Predicated region
    $region10: #{tpu_custom_call.1} parent=1 // pred_check
      _
    $region11: #{tpu_custom_call.1} parent=1 // pred_check_branch
      %31 = sbr.rel (0) target = $region13
    $region12: #{tpu_custom_call.1} parent=1 // pred_region
      _
    $region13: #{tpu_custom_call.1} parent=1 // pred_fallthru
      _
    // Predicated region
    $region14: #{tpu_custom_call.1} parent=1 // pred_check
      _
    $region15: #{tpu_custom_call.1} parent=1 // pred_check_branch
      %33 = sbr.rel (0) target = $region17
    $region16: #{tpu_custom_call.1} parent=1 // pred_region
      _
    $region17: #{tpu_custom_call.1} parent=1 // pred_fallthru
      _
    // Predicated region
    $region18: #{tpu_custom_call.1} parent=1 // pred_check
      _
    $region19: #{tpu_custom_call.1} parent=1 // pred_check_branch
      %35 = sbr.rel (0) target = $region21
    $region20: #{tpu_custom_call.1} parent=1 // pred_region
      %s37 = ssub.s32 2048, 2048
      %38 = vsyncadd [#allocation3], %s37
      %s39 = sshll.u32 [#allocation6], 4
      %s40 = int_to_ptr.vmem [resolvable:$true] %s39
      %45 = dma.hbm_to_vmem [thread:$0]  %s4, 2048, %s40, [#allocation3], 64, 64, 4
    $region21: #{tpu_custom_call.1} parent=1 // pred_fallthru
      _
    // Predicated region
    $region22: #{tpu_custom_call.1} parent=1 // pred_check
      _
    $region23: #{tpu_custom_call.1} parent=1 // pred_check_branch
      %47 = sbr.rel (0) target = $region25
    $region24: #{tpu_custom_call.1} parent=1 // pred_region
      _
    $region25: #{tpu_custom_call.1} parent=1 // pred_fallthru
      _
    // Predicated region
    $region26: #{tpu_custom_call.1} parent=1 // pred_check
      _
    $region27: #{tpu_custom_call.1} parent=1 // pred_check_branch
      %49 = sbr.rel (0) target = $region29
    $region28: #{tpu_custom_call.1} parent=1 // pred_region
      _
    $region29: #{tpu_custom_call.1} parent=1 // pred_fallthru
      _
    // Predicated region
    $region30: #{tpu_custom_call.1} parent=1 // pred_check
      _
    $region31: #{tpu_custom_call.1} parent=1 // pred_check_branch
      %51 = sbr.rel (0) target = $region33
    $region32: #{tpu_custom_call.1} parent=1 // pred_region
      _
    $region33: #{tpu_custom_call.1} parent=1 // pred_fallthru
      _
    // Predicated region
    $region34: #{tpu_custom_call.1} parent=1 // pred_check
      _
    $region35: #{tpu_custom_call.1} parent=1 // pred_check_branch
      %53 = sbr.rel (0) target = $region37
    $region36: #{tpu_custom_call.1} parent=1 // pred_region
      _
    $region37: #{tpu_custom_call.1} parent=1 // pred_fallthru
      _
    // Predicated region
    $region38: #{tpu_custom_call.1} parent=1 // pred_check
      _
    $region39: #{tpu_custom_call.1} parent=1 // pred_check_branch
      %55 = sbr.rel (0) target = $region41
    $region40: #{tpu_custom_call.1} parent=1 // pred_region
      _
    $region41: #{tpu_custom_call.1} parent=1 // pred_fallthru
      _
    // Predicated region
    $region42: #{tpu_custom_call.1} parent=1 // pred_check
      _
    $region43: #{tpu_custom_call.1} parent=1 // pred_check_branch
      %57 = sbr.rel (0) target = $region45
    $region44: #{tpu_custom_call.1} parent=1 // pred_region
      %58 = dma.done [#allocation5], 16
    $region45: #{tpu_custom_call.1} parent=1 // pred_fallthru
      _
    // Predicated region
    $region46: #{tpu_custom_call.1} parent=1 // pred_check
      _
    $region47: #{tpu_custom_call.1} parent=1 // pred_check_branch
      %60 = sbr.rel (0) target = $region49
    $region48: #{tpu_custom_call.1} parent=1 // pred_region
      %61 = dma.done [#allocation3], 2048
    $region49: #{tpu_custom_call.1} parent=1 // pred_fallthru
      _
    %62 = sfence
    %s64 = sld [smem:[#allocation2]]
    %s65 = sld [smem:[#allocation2 + $0x1]]
    %s66 = sld [smem:[#allocation2 + $0x2]]
    %v67 = vld [vmem:[%s1] sm:$0xff]
    %v68 = vpack.c.bf16 %v67, %v67
    %v69 = vld [vmem:[%s2] sm:$0x77]
    %v70 = vld [vmem:[%s3] sm:$0x3]
    %v72 = vlaneseq
    %v73 = vshrl.u32 %v72, 7
    %v74 = vsub.s32 0, %v73
    %v75 = vrot.slane %v70, %v74
    %v76 = vlaneseq
    %v77 = vshrl.u32 %v76, 7
    %v78 = vsub.s32 1, %v77
    %v79 = vrot.slane %v70, %v78
    %v83 = vunpack.c.l.b16 %v69
    %v84 = vunpack.c.h.b16 %v69
    %v85 = vpack.c.b16 %v83, %v83
    %v86 = vpack.c.b16 %v84, %v84
    %vm87 = vcmask 48128
    %v89 = vsel %vm87, %v68, 0
    %vm91 = vcmask 1042432
    %v93 = vsel %vm91, %v85, 0
    %v96 = vsel %vm91, %v86, 0
    %98 = vmatprep.subr.bf16.mxu0 %v96
    %99 = vmatpush1.bf16.msra.mxu0 %v93
    %100 = vmatprep.subr.bf16.mxu0 0
    %101 = vmatpush1.bf16.msra.mxu0 0
    %102 = vmatprep.subr.bf16.mxu0 0
    %103 = vmatpush1.bf16.msra.mxu0 0
    %104 = vmatprep.subr.bf16.mxu0 0
    %105 = vmatpush1.bf16.msra.mxu0 0
    %106 = vmatprep.subr.bf16.mxu0 0
    %107 = vmatpush1.bf16.msra.mxu0 0
    %108 = vmatprep.subr.bf16.mxu0 0
    %109 = vmatpush1.bf16.msra.mxu0 0
    %110 = vmatprep.subr.bf16.mxu0 0
    %111 = vmatpush1.bf16.msra.mxu0 0
    %112 = vmatprep.subr.bf16.mxu0 0
    %113 = vmatpush1.bf16.msra.mxu0 0
    %114 = vmatprep.subr.bf16.mxu0 0
    %115 = vmatpush1.bf16.msra.mxu0 0
    %116 = vmatprep.subr.bf16.mxu0 0
    %117 = vmatpush1.bf16.msra.mxu0 0
    %118 = vmatprep.subr.bf16.mxu0 0
    %119 = vmatpush1.bf16.msra.mxu0 0
    %120 = vmatprep.subr.bf16.mxu0 0
    %121 = vmatpush1.bf16.msra.mxu0 0
    %122 = vmatprep.subr.bf16.mxu0 0
    %123 = vmatpush1.bf16.msra.mxu0 0
    %124 = vmatprep.subr.bf16.mxu0 0
    %125 = vmatpush1.bf16.msra.mxu0 0
    %126 = vmatprep.subr.bf16.mxu0 0
    %127 = vmatpush1.bf16.msra.mxu0 0
    %128 = vmatprep.subr.bf16.mxu0 0
    %129 = vmatpush1.bf16.msra.mxu0 0
    %130 = vmatprep.mubr.bf16.mxu0 0
    %131 = vmatmul.mubr.bf16.gmra.mrb[0].mxu0 %v89
    %v132 = vpop.f32.mrb[0].mxu0
    %v133 = vadd.f32 %v75, %v132
    %v134 = vpop.f32.mrb[0].mxu0
    %v135 = vadd.f32 %v79, %v134
    %v136 = vpop.f32.mrb[0].mxu0
    %v137 = vpop.f32.mrb[0].mxu0
    %138 = vdwg.mxu0
    %vm139 = vcmp.ge.f32.partialorder %v133, 0.0
    %vm140 = vcmp.ge.f32.partialorder %v135, 0.0
    %v141 = vstv %s64
    %v142 = vmul.f32 %v141, %v133
    %v143 = vmul.f32 %v141, %v135
    %v144 = vsel %vm139, %v133, %v142
    %v145 = vsel %vm140, %v135, %v143
    %v146 = vpack.c.bf16 %v144, %v144
    %v147 = vpack.c.bf16 %v145, %v145
    %v148 = vld [vmem:[#allocation6] sm:$0xf]
    %v149 = vld [vmem:[#allocation6 + $0x4] sm:$0xf]
    %v150 = vld [vmem:[#allocation6 + $0x8] sm:$0xf]
    %v151 = vld [vmem:[#allocation6 + $0xc] sm:$0xf]
    %v152 = vld [vmem:[#allocation6 + $0x10] sm:$0xf]
    %v153 = vld [vmem:[#allocation6 + $0x14] sm:$0xf]
    %v154 = vld [vmem:[#allocation6 + $0x18] sm:$0xf]
    %v155 = vld [vmem:[#allocation6 + $0x1c] sm:$0xf]
    %v156 = vld [vmem:[#allocation6 + $0x20] sm:$0xf]
    %v157 = vld [vmem:[#allocation6 + $0x24] sm:$0xf]
    %v158 = vld [vmem:[#allocation6 + $0x28] sm:$0xf]
    %v159 = vld [vmem:[#allocation6 + $0x2c] sm:$0xf]
    %v160 = vld [vmem:[#allocation6 + $0x30] sm:$0xf]
    %v161 = vld [vmem:[#allocation6 + $0x34] sm:$0xf]
    %v162 = vld [vmem:[#allocation6 + $0x38] sm:$0xf]
    %v163 = vld [vmem:[#allocation6 + $0x3c] sm:$0xf]
    %v164 = vld [vmem:[#allocation6 + $0x40] sm:$0xf]
    %v165 = vld [vmem:[#allocation6 + $0x44] sm:$0xf]
    %v166 = vld [vmem:[#allocation6 + $0x48] sm:$0xf]
    %v167 = vld [vmem:[#allocation6 + $0x4c] sm:$0xf]
    %v168 = vld [vmem:[#allocation6 + $0x50] sm:$0xf]
    %v169 = vld [vmem:[#allocation6 + $0x54] sm:$0xf]
    %v170 = vld [vmem:[#allocation6 + $0x58] sm:$0xf]
    %v171 = vld [vmem:[#allocation6 + $0x5c] sm:$0xf]
    %v172 = vld [vmem:[#allocation6 + $0x60] sm:$0xf]
    %v173 = vld [vmem:[#allocation6 + $0x64] sm:$0xf]
    %v174 = vld [vmem:[#allocation6 + $0x68] sm:$0xf]
    %v175 = vld [vmem:[#allocation6 + $0x6c] sm:$0xf]
    %v176 = vld [vmem:[#allocation6 + $0x70] sm:$0xf]
    %v177 = vld [vmem:[#allocation6 + $0x74] sm:$0xf]
    %v178 = vld [vmem:[#allocation6 + $0x78] sm:$0xf]
    %v179 = vld [vmem:[#allocation6 + $0x7c] sm:$0xf]
    %v180 = vld [vmem:[%s5] sm:$0x1]
    %v182 = vlaneseq
    %v183 = vshrl.u32 %v182, 7
    %v184 = vsub.s32 0, %v183
    %v185 = vrot.slane %v180, %v184
    %v219 = vunpack.c.l.b16 %v148
    %v220 = vunpack.c.l.b16 %v149
    %v221 = vunpack.c.l.b16 %v150
    %v222 = vunpack.c.l.b16 %v151
    %v223 = vunpack.c.l.b16 %v152
    %v224 = vunpack.c.l.b16 %v153
    %v225 = vunpack.c.l.b16 %v154
    %v226 = vunpack.c.l.b16 %v155
    %v227 = vunpack.c.l.b16 %v156
    %v228 = vunpack.c.l.b16 %v157
    %v229 = vunpack.c.l.b16 %v158
    %v230 = vunpack.c.l.b16 %v159
    %v231 = vunpack.c.l.b16 %v160
    %v232 = vunpack.c.l.b16 %v161
    %v233 = vunpack.c.l.b16 %v162
    %v234 = vunpack.c.l.b16 %v163
    %v235 = vunpack.c.l.b16 %v164
    %v236 = vunpack.c.l.b16 %v165
    %v237 = vunpack.c.l.b16 %v166
    %v238 = vunpack.c.l.b16 %v167
    %v239 = vunpack.c.l.b16 %v168
    %v240 = vunpack.c.l.b16 %v169
    %v241 = vunpack.c.l.b16 %v170
    %v242 = vunpack.c.l.b16 %v171
    %v243 = vunpack.c.l.b16 %v172
    %v244 = vunpack.c.l.b16 %v173
    %v245 = vunpack.c.l.b16 %v174
    %v246 = vunpack.c.l.b16 %v175
    %v247 = vunpack.c.l.b16 %v176
    %v248 = vunpack.c.l.b16 %v177
    %v249 = vunpack.c.l.b16 %v178
    %v250 = vunpack.c.l.b16 %v179
    %v251 = vpack.c.b16 %v220, %v219
    %v252 = vpack.c.b16 %v222, %v221
    %v253 = vpack.c.b16 %v224, %v223
    %v254 = vpack.c.b16 %v226, %v225
    %v255 = vpack.c.b16 %v228, %v227
    %v256 = vpack.c.b16 %v230, %v229
    %v257 = vpack.c.b16 %v232, %v231
    %v258 = vpack.c.b16 %v234, %v233
    %v259 = vpack.c.b16 %v236, %v235
    %v260 = vpack.c.b16 %v238, %v237
    %v261 = vpack.c.b16 %v240, %v239
    %v262 = vpack.c.b16 %v242, %v241
    %v263 = vpack.c.b16 %v244, %v243
    %v264 = vpack.c.b16 %v246, %v245
    %v265 = vpack.c.b16 %v248, %v247
    %v266 = vpack.c.b16 %v250, %v249
    %283 = vmatprep.subr.bf16.mxu0 0
    %284 = vmatpush1.bf16.msra.mxu0 %v251
    %285 = vmatprep.subr.bf16.mxu0 0
    %286 = vmatpush1.bf16.msra.mxu0 %v252
    %287 = vmatprep.subr.bf16.mxu0 0
    %288 = vmatpush1.bf16.msra.mxu0 %v253
    %289 = vmatprep.subr.bf16.mxu0 0
    %290 = vmatpush1.bf16.msra.mxu0 %v254
    %291 = vmatprep.subr.bf16.mxu0 0
    %292 = vmatpush1.bf16.msra.mxu0 %v255
    %293 = vmatprep.subr.bf16.mxu0 0
    %294 = vmatpush1.bf16.msra.mxu0 %v256
    %295 = vmatprep.subr.bf16.mxu0 0
    %296 = vmatpush1.bf16.msra.mxu0 %v257
    %297 = vmatprep.subr.bf16.mxu0 0
    %298 = vmatpush1.bf16.msra.mxu0 %v258
    %299 = vmatprep.subr.bf16.mxu0 0
    %300 = vmatpush1.bf16.msra.mxu0 %v259
    %301 = vmatprep.subr.bf16.mxu0 0
    %302 = vmatpush1.bf16.msra.mxu0 %v260
    %303 = vmatprep.subr.bf16.mxu0 0
    %304 = vmatpush1.bf16.msra.mxu0 %v261
    %305 = vmatprep.subr.bf16.mxu0 0
    %306 = vmatpush1.bf16.msra.mxu0 %v262
    %307 = vmatprep.subr.bf16.mxu0 0
    %308 = vmatpush1.bf16.msra.mxu0 %v263
    %309 = vmatprep.subr.bf16.mxu0 0
    %310 = vmatpush1.bf16.msra.mxu0 %v264
    %311 = vmatprep.subr.bf16.mxu0 0
    %312 = vmatpush1.bf16.msra.mxu0 %v265
    %313 = vmatprep.subr.bf16.mxu0 0
    %314 = vmatpush1.bf16.msra.mxu0 %v266
    %315 = vmatprep.mubr.bf16.mxu0 %v147
    %316 = vmatmul.mubr.bf16.gmra.mrb[0].mxu0 %v146
    %v317 = vpop.f32.mrb[0].mxu0
    %v318 = vadd.f32 %v185, %v317
    %v319 = vpop.f32.mrb[0].mxu0
    %v320 = vpop.f32.mrb[0].mxu0
    %v321 = vpop.f32.mrb[0].mxu0
    %322 = vdwg.mxu0
    %vm323 = vcmp.ge.f32.partialorder %v318, 0.0
    %v324 = vstv %s65
    %v325 = vmul.f32 %v324, %v318
    %v326 = vsel %vm323, %v318, %v325
    %v327 = vpack.c.bf16 %v326, %v326
    %v328 = vld [vmem:[%s6] sm:$0xf]
    %v329 = vld [vmem:[%s6 + $0x4] sm:$0xf]
    %v330 = vld [vmem:[%s6 + $0x8] sm:$0xf]
    %v331 = vld [vmem:[%s6 + $0xc] sm:$0xf]
    %v332 = vld [vmem:[%s6 + $0x10] sm:$0xf]
    %v333 = vld [vmem:[%s6 + $0x14] sm:$0xf]
    %v334 = vld [vmem:[%s6 + $0x18] sm:$0xf]
    %v335 = vld [vmem:[%s6 + $0x1c] sm:$0xf]
    %v336 = vld [vmem:[%s6 + $0x20] sm:$0xf]
    %v337 = vld [vmem:[%s6 + $0x24] sm:$0xf]
    %v338 = vld [vmem:[%s6 + $0x28] sm:$0xf]
    %v339 = vld [vmem:[%s6 + $0x2c] sm:$0xf]
    %v340 = vld [vmem:[%s6 + $0x30] sm:$0xf]
    %v341 = vld [vmem:[%s6 + $0x34] sm:$0xf]
    %v342 = vld [vmem:[%s6 + $0x38] sm:$0xf]
    %v343 = vld [vmem:[%s6 + $0x3c] sm:$0xf]
    %v344 = vld [vmem:[%s7] sm:$0x1]
    %v346 = vlaneseq
    %v347 = vshrl.u32 %v346, 7
    %v348 = vsub.s32 0, %v347
    %v349 = vrot.slane %v344, %v348
    %v367 = vunpack.c.l.b16 %v328
    %v368 = vunpack.c.l.b16 %v329
    %v369 = vunpack.c.l.b16 %v330
    %v370 = vunpack.c.l.b16 %v331
    %v371 = vunpack.c.l.b16 %v332
    %v372 = vunpack.c.l.b16 %v333
    %v373 = vunpack.c.l.b16 %v334
    %v374 = vunpack.c.l.b16 %v335
    %v375 = vunpack.c.l.b16 %v336
    %v376 = vunpack.c.l.b16 %v337
    %v377 = vunpack.c.l.b16 %v338
    %v378 = vunpack.c.l.b16 %v339
    %v379 = vunpack.c.l.b16 %v340
    %v380 = vunpack.c.l.b16 %v341
    %v381 = vunpack.c.l.b16 %v342
    %v382 = vunpack.c.l.b16 %v343
    %v383 = vpack.c.b16 %v368, %v367
    %v384 = vpack.c.b16 %v370, %v369
    %v385 = vpack.c.b16 %v372, %v371
    %v386 = vpack.c.b16 %v374, %v373
    %v387 = vpack.c.b16 %v376, %v375
    %v388 = vpack.c.b16 %v378, %v377
    %v389 = vpack.c.b16 %v380, %v379
    %v390 = vpack.c.b16 %v382, %v381
    %399 = vmatprep.subr.bf16.mxu0 0
    %400 = vmatpush1.bf16.msra.mxu0 %v383
    %401 = vmatprep.subr.bf16.mxu0 0
    %402 = vmatpush1.bf16.msra.mxu0 %v384
    %403 = vmatprep.subr.bf16.mxu0 0
    %404 = vmatpush1.bf16.msra.mxu0 %v385
    %405 = vmatprep.subr.bf16.mxu0 0
    %406 = vmatpush1.bf16.msra.mxu0 %v386
    %407 = vmatprep.subr.bf16.mxu0 0
    %408 = vmatpush1.bf16.msra.mxu0 %v387
    %409 = vmatprep.subr.bf16.mxu0 0
    %410 = vmatpush1.bf16.msra.mxu0 %v388
    %411 = vmatprep.subr.bf16.mxu0 0
    %412 = vmatpush1.bf16.msra.mxu0 %v389
    %413 = vmatprep.subr.bf16.mxu0 0
    %414 = vmatpush1.bf16.msra.mxu0 %v390
    %415 = vmatprep.subr.bf16.mxu0 0
    %416 = vmatpush1.bf16.msra.mxu0 0
    %417 = vmatprep.subr.bf16.mxu0 0
    %418 = vmatpush1.bf16.msra.mxu0 0
    %419 = vmatprep.subr.bf16.mxu0 0
    %420 = vmatpush1.bf16.msra.mxu0 0
    %421 = vmatprep.subr.bf16.mxu0 0
    %422 = vmatpush1.bf16.msra.mxu0 0
    %423 = vmatprep.subr.bf16.mxu0 0
    %424 = vmatpush1.bf16.msra.mxu0 0
    %425 = vmatprep.subr.bf16.mxu0 0
    %426 = vmatpush1.bf16.msra.mxu0 0
    %427 = vmatprep.subr.bf16.mxu0 0
    %428 = vmatpush1.bf16.msra.mxu0 0
    %429 = vmatprep.subr.bf16.mxu0 0
    %430 = vmatpush1.bf16.msra.mxu0 0
    %431 = vmatprep.mubr.bf16.mxu0 0
    %432 = vmatmul.mubr.bf16.gmra.mrb[0].mxu0 %v327
    %v433 = vpop.f32.mrb[0].mxu0
    %v434 = vadd.f32 %v349, %v433
    %v435 = vpop.f32.mrb[0].mxu0
    %v436 = vpop.f32.mrb[0].mxu0
    %v437 = vpop.f32.mrb[0].mxu0
    %438 = vdwg.mxu0
    %vm439 = vcmp.ge.f32.partialorder %v434, 0.0
    %v440 = vstv %s66
    %v441 = vmul.f32 %v440, %v434
    %v442 = vsel %vm439, %v434, %v441
    %v443 = vpack.c.bf16 %v442, %v442
    %v444 = vld [vmem:[%s8] sm:$0xf]
    %v445 = vld [vmem:[%s8 + $0x4] sm:$0xf]
    %v446 = vld [vmem:[%s8 + $0x8] sm:$0xf]
    %v447 = vld [vmem:[%s8 + $0xc] sm:$0xf]
    %v448 = vld [vmem:[%s8 + $0x10] sm:$0xf]
    %v449 = vld [vmem:[%s8 + $0x14] sm:$0xf]
    %v450 = vld [vmem:[%s8 + $0x18] sm:$0xf]
    %v451 = vld [vmem:[%s8 + $0x1c] sm:$0xf]
    %v452 = vld [vmem:[%s9] sm:$0x1]
    %v454 = vlaneseq
    %v455 = vshrl.u32 %v454, 7
    %v456 = vsub.s32 0, %v455
    %v457 = vrot.slane %v452, %v456
    %v467 = vunpack.c.l.b16 %v444
    %v468 = vunpack.c.l.b16 %v445
    %v469 = vunpack.c.l.b16 %v446
    %v470 = vunpack.c.l.b16 %v447
    %v471 = vunpack.c.l.b16 %v448
    %v472 = vunpack.c.l.b16 %v449
    %v473 = vunpack.c.l.b16 %v450
    %v474 = vunpack.c.l.b16 %v451
    %v475 = vpack.c.b16 %v468, %v467
    %v476 = vpack.c.b16 %v470, %v469
    %v477 = vpack.c.b16 %v472, %v471
    %v478 = vpack.c.b16 %v474, %v473
    %vm483 = vcmask 523264
    %v485 = vsel %vm483, %v443, 0
    %487 = vmatprep.subr.bf16.mxu0 0
    %488 = vmatpush1.bf16.msra.mxu0 %v475
    %489 = vmatprep.subr.bf16.mxu0 0
    %490 = vmatpush1.bf16.msra.mxu0 %v476
    %491 = vmatprep.subr.bf16.mxu0 0
    %492 = vmatpush1.bf16.msra.mxu0 %v477
    %493 = vmatprep.subr.bf16.mxu0 0
    %494 = vmatpush1.bf16.msra.mxu0 %v478
    %495 = vmatprep.subr.bf16.mxu0 0
    %496 = vmatpush1.bf16.msra.mxu0 0
    %497 = vmatprep.subr.bf16.mxu0 0
    %498 = vmatpush1.bf16.msra.mxu0 0
    %499 = vmatprep.subr.bf16.mxu0 0
    %500 = vmatpush1.bf16.msra.mxu0 0
    %501 = vmatprep.subr.bf16.mxu0 0
    %502 = vmatpush1.bf16.msra.mxu0 0
    %503 = vmatprep.subr.bf16.mxu0 0
    %504 = vmatpush1.bf16.msra.mxu0 0
    %505 = vmatprep.subr.bf16.mxu0 0
    %506 = vmatpush1.bf16.msra.mxu0 0
    %507 = vmatprep.subr.bf16.mxu0 0
    %508 = vmatpush1.bf16.msra.mxu0 0
    %509 = vmatprep.subr.bf16.mxu0 0
    %510 = vmatpush1.bf16.msra.mxu0 0
    %511 = vmatprep.subr.bf16.mxu0 0
    %512 = vmatpush1.bf16.msra.mxu0 0
    %513 = vmatprep.subr.bf16.mxu0 0
    %514 = vmatpush1.bf16.msra.mxu0 0
    %515 = vmatprep.subr.bf16.mxu0 0
    %516 = vmatpush1.bf16.msra.mxu0 0
    %517 = vmatprep.subr.bf16.mxu0 0
    %518 = vmatpush1.bf16.msra.mxu0 0
    %519 = vmatprep.mubr.bf16.mxu0 0
    %520 = vmatmul.mubr.bf16.gmra.mrb[0].mxu0 %v485
    %v521 = vpop.f32.mrb[0].mxu0
    %v522 = vadd.f32 %v457, %v521
    %v523 = vpop.f32.mrb[0].mxu0
    %v524 = vpop.f32.mrb[0].mxu0
    %v525 = vpop.f32.mrb[0].mxu0
    %526 = vdwg.mxu0
    %527 = vst [vmem:[#allocation7] sm:$0xff] %v522
    // Predicated region
    $region50: #{tpu_custom_call.1} parent=1 // pred_check
      _
    $region51: #{tpu_custom_call.1} parent=1 // pred_check_branch
      %529 = sbr.rel (0) target = $region53
    $region52: #{tpu_custom_call.1} parent=1 // pred_region
      %s531 = ssub.s32 128, 128
      %532 = vsyncadd [#allocation4], %s531
      %s534 = sshll.u32 [#allocation7], 4
      %s535 = int_to_ptr.vmem [resolvable:$true] %s534
      %537 = dma.vmem_to_hbm [thread:$0]  %s535, 128, %s10, [#allocation4]
    $region53: #{tpu_custom_call.1} parent=1 // pred_fallthru
      _
    // Predicated region
    $region54: #{tpu_custom_call.1} parent=1 // pred_check
      _
    $region55: #{tpu_custom_call.1} parent=1 // pred_check_branch
      %539 = sbr.rel (0) target = $region57
    $region56: #{tpu_custom_call.1} parent=1 // pred_region
      %540 = dma.done [#allocation4], 128
    $region57: #{tpu_custom_call.1} parent=1 // pred_fallthru
      _
    %541 = vsyncpa [#allocation3], 1
    %542 = vsyncpa [#allocation4], 1
    %543 = vsyncpa [#allocation5], 1

</llo_original>
